<compile_context>
chip_gen: v7x
topology: tpu7x:2x2x1
jax: 0.10.0
libtpu: 0.0.40
codegen_flags: <defaults>
</compile_context>

<pallas_src>
import functools

import jax
import jax.numpy as jnp
from jax import lax
from jax.experimental import pallas as pl
from jax.experimental.pallas import tpu as pltpu

_LANE = 128
_SUBLANE = 8


def _round_up(x, m):
    return (x + m - 1) // m * m


def _conv_matmul_kernel(x_ref, w_ref, b_ref, o_ref):
    # x_ref: (1, K_p, L_TILE)   stacked-tap input block (taps x channels deep)
    # w_ref: (C_out_p, K_p)     fused tap weights
    # b_ref: (C_out_p, 1)       bias column
    # o_ref: (1, C_out_p, L_TILE)
    acc = jnp.dot(w_ref[...], x_ref[0],
                  preferred_element_type=jnp.float32)       # single deep-K MXU op
    o_ref[0] = (acc + b_ref[...]).astype(o_ref.dtype)


def _pick_l_tile(K_p, C_out_p, in_itemsize, L_pad):
    """Largest 128-multiple divisor of L_pad whose double-buffered blocks fit.

    Budget ~12 MiB keeps blocks inside v5e's 16 MiB scoped-VMEM default and far
    below v7x's 64 MiB physical VMEM (review items #5/#6)."""
    budget = 12 * 1024 * 1024
    cap = 2048
    while cap > _LANE and 2 * cap * (K_p * in_itemsize + C_out_p * 4) > budget:
        cap //= 2
    n_lanes = L_pad // _LANE
    best = 1
    for d in range(1, n_lanes + 1):
        if n_lanes % d == 0 and d * _LANE <= cap:
            best = d
    return best * _LANE


def conv_layer(x, weight, bias, stride, compute_dtype=None):
    """ReflectionPad2d(k//2) + Conv2d(stride, dilation=1) forward.

    x: (N, C_in, H, W), weight: (C_out, C_in, k, k), bias: (C_out,).
    compute_dtype: pass jnp.bfloat16 on v6e/v7x for MXU-peak operands
    (accumulation stays f32).  Default: x.dtype (f32, matches the module).
    """
    N, C_in, H, W = x.shape
    C_out, C_in_w, kH, kW = weight.shape
    assert C_in == C_in_w and kH == kW, "square kernel expected"
    k = kH
    p = k // 2
    if compute_dtype is None:
        compute_dtype = x.dtype
    compute_dtype = jnp.dtype(compute_dtype)

    # ---- wrapper layout glue (no compute) -----------------------------------
    xpad = jnp.pad(x, ((0, 0), (0, 0), (p, p), (p, p)), mode="reflect")
    H_p, W_p = H + 2 * p, W + 2 * p
    H_out = (H_p - k) // stride + 1
    W_out = (W_p - k) // stride + 1
    L = H_out * W_out

    # Stack the k*k taps (stride baked in) along the contraction axis:
    # row (dy, dx, ci), lane (oh*W_out + ow).
    slabs = []
    for dy in range(k):
        for dx in range(k):
            s = lax.slice(
                xpad,
                (0, 0, dy, dx),
                (N, C_in,
                 dy + (H_out - 1) * stride + 1,
                 dx + (W_out - 1) * stride + 1),
                (1, 1, stride, stride))
            slabs.append(s.reshape(N, C_in, L))
    x_stack = jnp.concatenate(slabs, axis=1)                 # (N, k*k*C_in, L)

    K = k * k * C_in
    K_p = _round_up(K, _SUBLANE)
    C_out_p = _round_up(C_out, _SUBLANE)
    L_pad = _round_up(L, _LANE)

    in_itemsize = compute_dtype.itemsize
    L_tile = _pick_l_tile(K_p, C_out_p, in_itemsize, L_pad)
    n_l_tiles = L_pad // L_tile

    x_stack = jnp.pad(x_stack, ((0, 0), (0, K_p - K), (0, L_pad - L)))
    x_stack = x_stack.astype(compute_dtype)

    # weight[co, ci, dy, dx] -> row co, column (dy, dx, ci) matching x_stack.
    w_fused = jnp.transpose(weight, (0, 2, 3, 1)).reshape(C_out, K)
    w_fused = jnp.pad(w_fused, ((0, C_out_p - C_out), (0, K_p - K)))
    w_fused = w_fused.astype(compute_dtype)
    b_col = jnp.pad(bias, (0, C_out_p - C_out)).reshape(C_out_p, 1)
    b_col = b_col.astype(jnp.float32)

    flops = 2 * N * C_out_p * K_p * L_pad
    bytes_accessed = (N * K_p * L_pad * in_itemsize
                      + C_out_p * K_p * in_itemsize
                      + C_out_p * 4
                      + N * C_out_p * L_pad * x.dtype.itemsize)

    out_flat = pl.pallas_call(
        _conv_matmul_kernel,
        out_shape=jax.ShapeDtypeStruct((N, C_out_p, L_pad), x.dtype),
        grid=(N, n_l_tiles),
        in_specs=[
            pl.BlockSpec((1, K_p, L_tile), lambda n, l: (n, 0, l)),
            pl.BlockSpec((C_out_p, K_p), lambda n, l: (0, 0)),
            pl.BlockSpec((C_out_p, 1), lambda n, l: (0, 0)),
        ],
        out_specs=pl.BlockSpec((1, C_out_p, L_tile), lambda n, l: (n, 0, l)),
        compiler_params=pltpu.CompilerParams(
            dimension_semantics=("parallel", "parallel")),
        cost_estimate=pl.CostEstimate(
            flops=flops, transcendentals=0, bytes_accessed=bytes_accessed),
    )(x_stack, w_fused, b_col)

    # Drop K/C_out/L padding, restore NCHW.
    out = out_flat[:, :C_out, :L].reshape(N, C_out, H_out, W_out)
    return out


def _reference(x, weight, bias, stride):
    k = weight.shape[-1]
    p = k // 2
    xpad = jnp.pad(x, ((0, 0), (0, 0), (p, p), (p, p)), mode="reflect")
    return lax.conv_general_dilated(
        xpad, weight, window_strides=(stride, stride), padding="VALID",
        dimension_numbers=("NCHW", "OIHW", "NCHW"),
        precision=lax.Precision.HIGHEST) + bias[None, :, None, None]


if __name__ == "__main__":
    key = jax.random.PRNGKey(0)
    k1, k2, k3 = jax.random.split(key, 3)

    N, C_in, H, W = 2, 4, 16, 16
    C_out, ksize = 8, 3

    x = jax.random.normal(k1, (N, C_in, H, W), dtype=jnp.float32)
    weight = jax.random.normal(k2, (C_out, C_in, ksize, ksize),
                               dtype=jnp.float32) * 0.2
    bias = jax.random.normal(k3, (C_out,), dtype=jnp.float32) * 0.1

    for stride in (1, 2):   # stride=2 exercises the no-overcompute strided path
        out = conv_layer(x, weight, bias, stride)
        out = jax.block_until_ready(out)
        ref = _reference(x, weight, bias, stride)
        assert out.shape == ref.shape and out.dtype == ref.dtype
        max_err = float(jnp.max(jnp.abs(out - ref)))
        assert jnp.allclose(out, ref, atol=5e-3, rtol=5e-3), (stride, max_err)

    print("KERNEL_OK")
</pallas_src>

<mosaic_0001>
module attributes {stable_mosaic.version = 11 : i64} {
  func.func @_conv_matmul_kernel(%arg0: i32, %arg1: i32, %arg2: memref<1x40x256xf32, #tpu.memory_space<vmem>>, %arg3: memref<8x40xf32, #tpu.memory_space<vmem>>, %arg4: memref<8x1xf32, #tpu.memory_space<vmem>>, %arg5: memref<1x8x256xf32, #tpu.memory_space<vmem>>) attributes {dimension_semantics = [#tpu.dimension_semantics<parallel>, #tpu.dimension_semantics<parallel>], iteration_bounds = array<i64: 2, 1>, scalar_prefetch = 0 : i64, scratch_operands = 0 : i64, tpu.core_type = #tpu.core_type<tc>, window_params = [{transform_indices = @transform_0, window_bounds = array<i64: 1, 40, 256>}, {pipeline_mode = #tpu.pipeline_mode<synchronous>, transform_indices = @transform_1, window_bounds = array<i64: 8, 40>}, {pipeline_mode = #tpu.pipeline_mode<synchronous>, transform_indices = @transform_2, window_bounds = array<i64: 8, 1>}, {transform_indices = @transform_3, window_bounds = array<i64: 1, 8, 256>}]} {
    %c0 = arith.constant 0 : index
    %c0_0 = arith.constant 0 : index
    %0 = vector.load %arg3[%c0, %c0_0] : memref<8x40xf32, #tpu.memory_space<vmem>>, vector<8x40xf32>
    %c0_1 = arith.constant 0 : index
    %c0_2 = arith.constant 0 : index
    %c0_3 = arith.constant 0 : index
    %1 = vector.load %arg2[%c0_1, %c0_2, %c0_3] : memref<1x40x256xf32, #tpu.memory_space<vmem>>, vector<1x40x256xf32>
    %2 = vector.shape_cast %1 : vector<1x40x256xf32> to vector<40x256xf32>
    %cst = arith.constant dense<0.000000e+00> : vector<8x256xf32>
    %3 = tpu.matmul %0, %2, %cst {dimension_numbers = #tpu.dot_dimension_numbers<[1], [0], [0], [1], [0, 0, 1, 1], [], []>} : vector<8x40xf32>, vector<40x256xf32>, vector<8x256xf32> -> vector<8x256xf32>
    %c0_4 = arith.constant 0 : index
    %c0_5 = arith.constant 0 : index
    %4 = vector.load %arg4[%c0_4, %c0_5] : memref<8x1xf32, #tpu.memory_space<vmem>>, vector<8x1xf32>
    %5 = vector.broadcast %4 : vector<8x1xf32> to vector<8x256xf32>
    %6 = arith.addf %3, %5 : vector<8x256xf32>
    %c0_6 = arith.constant 0 : index
    %c0_7 = arith.constant 0 : index
    %c0_8 = arith.constant 0 : index
    %7 = vector.load %arg5[%c0_6, %c0_7, %c0_8] : memref<1x8x256xf32, #tpu.memory_space<vmem>>, vector<1x8x256xf32>
    %8 = vector.shape_cast %7 : vector<1x8x256xf32> to vector<8x256xf32>
    %9 = vector.shape_cast %6 : vector<8x256xf32> to vector<1x8x256xf32>
    tpu.vector_store %arg5[%c0_6, %c0_7, %c0_8], %9 {strides = array<i32>} : memref<1x8x256xf32, #tpu.memory_space<vmem>>, vector<1x8x256xf32>,
    return
  }
  func.func @transform_0(%arg0: i32, %arg1: i32) -> (i32, i32, i32) {
    %c0_i32 = arith.constant 0 : i32
    %c0_i32_0 = arith.constant 0 : i32
    return %arg0, %c0_i32, %arg1 : i32, i32, i32
  }
  func.func @transform_1(%arg0: i32, %arg1: i32) -> (i32, i32) {
    %c0_i32 = arith.constant 0 : i32
    %c0_i32_0 = arith.constant 0 : i32
    %c0_i32_1 = arith.constant 0 : i32
    return %c0_i32, %c0_i32_0 : i32, i32
  }
  func.func @transform_2(%arg0: i32, %arg1: i32) -> (i32, i32) {
    %c0_i32 = arith.constant 0 : i32
    %c0_i32_0 = arith.constant 0 : i32
    %c0_i32_1 = arith.constant 0 : i32
    return %c0_i32, %c0_i32_0 : i32, i32
  }
  func.func @transform_3(%arg0: i32, %arg1: i32) -> (i32, i32, i32) {
    %c0_i32 = arith.constant 0 : i32
    %c0_i32_0 = arith.constant 0 : i32
    return %arg0, %c0_i32, %arg1 : i32, i32, i32
  }
}

</mosaic_0001>

<llo_original>
// kernel: tpu_custom_call.1
$region0: #{tpu_custom_call.1}
  #allocation0 [shape = 'u32[]', space=smem, size = 0x4, offset = 0x4, fixed_abs, tag = 'smem constant byte address 0x4 - core index']
  #allocation1 [shape = 'u32[144,128]{1,0:T(1,128)}', space=vmem, size = 0x12000, scoped, tag = 'internal scratch']
  %s0 = inlined_call_operand.hbm [shape: f32[2,40,256], index: 0, kind: input, shape index: {}]
  %s1 = inlined_call_operand.vmem [shape: f32[8,40], index: 1, kind: input, shape index: {}]
  %s2 = inlined_call_operand.vmem [shape: f32[8,1], index: 2, kind: input, shape index: {}]
  %s3 = inlined_call_operand.hbm [shape: f32[2,8,256], index: 3, kind: output, shape index: {}]
  %s4 = sld [smem:[#allocation0]]
  $region49: #{tpu_custom_call.1} parent=0
    _
  %s6 = ssub.s32 1, %s4
  %s7 = scalar_select 0, %s6, %s4
  $region1: #{tpu_custom_call.1} parent=0
    #allocation2 [shape = 'u8[81920]{0}', space=vmem, size = 0x14000, scoped, tag = 'input window, operand 0']
    #allocation3 [shape = 's32[2]{0}', space=sflag, size = 0x8, scoped, tag = 'scoped memory for tpu_custom_call.1']
    #allocation4 [shape = 's32[2]{0}', space=sflag, size = 0x8, scoped, tag = 'scoped memory for tpu_custom_call.1']
    #allocation5 [shape = 'u8[16384]{0}', space=vmem, size = 0x4000, scoped, tag = 'output window, operand 0']
    %8 = vsyncpa [#allocation3], 0
    %s9 = scalar_lea.sflag [#allocation3], 1
    %10 = vsyncpa %s9, 0
    %11 = vsyncpa [#allocation4], 0
    %s12 = scalar_lea.sflag [#allocation4], 1
    %13 = vsyncpa %s12, 0
    loop: start=0, step=1, limit=4
    $region2: #{tpu_custom_call.1} parent=1 // loop_pre_header
      _
    $region3: #{tpu_custom_call.1} parent=1 // loop_header
      %s15 = sphi 0, %s19
      %p16 = scmp.ge.s32.totalorder %s15, 4
      %s22 = sphi 0, %s34
      %s23 = sphi 0, %s30
      %s24 = sphi 0, %s22
      %s25 = sphi 0, %s23
      %s26 = sphi 0, %s24
      %s27 = sphi 0, %s25
      %s39 = sphi 0, %s41
      %s42 = sphi 0, %s39
      %s43 = sphi 0, %s42
      %s59 = sphi 0, %s43
      %s63 = sphi 0, %s63
      %s65 = sphi 0, %s63
      %s66 = sphi 0, %s65
      %s80 = sphi 0, %s66
      %s84 = sphi 0, %s84
      %s86 = sphi 0, %s84
      %s87 = sphi 0, %s86
      %s101 = sphi 0, %s87
      %s109 = sphi 0, %s111
      %s112 = sphi 0, %s109
      %s113 = sphi 0, %s112
      %s129 = sphi 0, %s113
    $region4: #{tpu_custom_call.1} parent=1 // loop_header_branch
      %18 = sbr.rel (%p16) target = $region8
    $region5: #{tpu_custom_call.1} parent=1 // loop_body
      %s20 = ssub.s32 %s15, 1
      %s21 = ssub.s32 %s15, 2
      %s28 = sadd.s32 1, %s23
      %p29 = scmp.ge.s32.totalorder %s28, 1
      %s30 = scalar_select %p29, 0, %s28
      %s31 = sadd.s32 1, %s22
      %s32 = scalar_select %p29, %s31, %s22
      %p33 = scmp.ge.s32.totalorder %s32, 2
      %s34 = scalar_select %p33, 0, %s32
      %s35 = ssub.s32 %s22, %s34
      %s36 = ssub.s32 %s23, %s30
      %s37 = sor.u32 %s35, %s36
      %p38 = scmp.eq.s32.totalorder %s37, 0
      %s40 = sadd.s32 %s39, 1
      %s41 = scalar_select %p38, %s39, %s40
      %p44 = pneg %p38
      %p45 = scmp.eq.s32.totalorder %s15, 1
      %p46 = por %p44, %p45
      %p47 = scmp.ne.s32.totalorder %s39, %s42
      %p48 = scmp.eq.s32.totalorder %s15, 0
      %p49 = por %p47, %p48
      %p50 = scmp.ne.s32.totalorder %s39, %s42
      %p51 = scmp.eq.s32.totalorder %s20, 1
      %p52 = por %p50, %p51
      %p53 = scmp.ne.s32.totalorder %s42, %s43
      %p54 = scmp.eq.s32.totalorder %s20, 0
      %p55 = por %p53, %p54
      %p56 = scmp.ne.s32.totalorder %s42, %s43
      %p57 = scmp.eq.s32.totalorder %s21, 1
      %p58 = por %p56, %p57
      %p60 = scmp.ne.s32.totalorder %s43, %s59
      %p61 = scmp.eq.s32.totalorder %s21, 0
      %p62 = por %p60, %p61
      %s64 = sadd.s32 %s63, 1
      %p67 = scmp.eq.s32.totalorder %s15, 1
      %p68 = scmp.ne.s32.totalorder %s63, %s65
      %p69 = scmp.eq.s32.totalorder %s15, 0
      %p70 = por %p68, %p69
      %p71 = scmp.ne.s32.totalorder %s63, %s65
      %p72 = scmp.eq.s32.totalorder %s20, 1
      %p73 = por %p71, %p72
      %p74 = scmp.ne.s32.totalorder %s65, %s66
      %p75 = scmp.eq.s32.totalorder %s20, 0
      %p76 = por %p74, %p75
      %p77 = scmp.ne.s32.totalorder %s65, %s66
      %p78 = scmp.eq.s32.totalorder %s21, 1
      %p79 = por %p77, %p78
      %p81 = scmp.ne.s32.totalorder %s66, %s80
      %p82 = scmp.eq.s32.totalorder %s21, 0
      %p83 = por %p81, %p82
      %s85 = sadd.s32 %s84, 1
      %p88 = scmp.eq.s32.totalorder %s15, 1
      %p89 = scmp.ne.s32.totalorder %s84, %s86
      %p90 = scmp.eq.s32.totalorder %s15, 0
      %p91 = por %p89, %p90
      %p92 = scmp.ne.s32.totalorder %s84, %s86
      %p93 = scmp.eq.s32.totalorder %s20, 1
      %p94 = por %p92, %p93
      %p95 = scmp.ne.s32.totalorder %s86, %s87
      %p96 = scmp.eq.s32.totalorder %s20, 0
      %p97 = por %p95, %p96
      %p98 = scmp.ne.s32.totalorder %s86, %s87
      %p99 = scmp.eq.s32.totalorder %s21, 1
      %p100 = por %p98, %p99
      %p102 = scmp.ne.s32.totalorder %s87, %s101
      %p103 = scmp.eq.s32.totalorder %s21, 0
      %p104 = por %p102, %p103
      %s105 = ssub.s32 %s22, %s34
      %s106 = ssub.s32 %s23, %s30
      %s107 = sor.u32 %s105, %s106
      %p108 = scmp.eq.s32.totalorder %s107, 0
      %s110 = sadd.s32 %s109, 1
      %s111 = scalar_select %p108, %s109, %s110
      %p114 = pneg %p108
      %p115 = scmp.eq.s32.totalorder %s15, 1
      %p116 = por %p114, %p115
      %p117 = scmp.ne.s32.totalorder %s109, %s112
      %p118 = scmp.eq.s32.totalorder %s15, 0
      %p119 = por %p117, %p118
      %p120 = scmp.ne.s32.totalorder %s109, %s112
      %p121 = scmp.eq.s32.totalorder %s20, 1
      %p122 = por %p120, %p121
      %p123 = scmp.ne.s32.totalorder %s112, %s113
      %p124 = scmp.eq.s32.totalorder %s20, 0
      %p125 = por %p123, %p124
      %p126 = scmp.ne.s32.totalorder %s112, %s113
      %p127 = scmp.eq.s32.totalorder %s21, 1
      %p128 = por %p126, %p127
      %p130 = scmp.ne.s32.totalorder %s113, %s129
      %p131 = scmp.eq.s32.totalorder %s21, 0
      %p132 = por %p130, %p131
      %p133 = scmp.le.s32.totalorder 1, %s15
      %p134 = scmp.lt.s32.totalorder %s15, 3
      %p135 = pnand %p133, %p134
      %p136 = pneg %p135
      // Predicated region
      $region9: #{tpu_custom_call.1} parent=5 // pred_check
        _
      $region10: #{tpu_custom_call.1} parent=5 // pred_check_branch
        %138 = sbr.rel (%p135) target = $region12
      $region11: #{tpu_custom_call.1} parent=5 // pred_region
        %s139 = ssub.s32 %s15, 1
        // Predicated region
        $region13: #{tpu_custom_call.1} parent=11 // pred_check
          %p140 = pneg %p76
        $region14: #{tpu_custom_call.1} parent=11 // pred_check_branch
          %142 = sbr.rel (%p140) target = $region16
        $region15: #{tpu_custom_call.1} parent=11 // pred_region
          _
        $region16: #{tpu_custom_call.1} parent=11 // pred_fallthru
          _
        // Predicated region
        $region17: #{tpu_custom_call.1} parent=11 // pred_check
          %p143 = pneg %p97
        $region18: #{tpu_custom_call.1} parent=11 // pred_check_branch
          %145 = sbr.rel (%p143) target = $region20
        $region19: #{tpu_custom_call.1} parent=11 // pred_region
          _
        $region20: #{tpu_custom_call.1} parent=11 // pred_fallthru
          _
      $region12: #{tpu_custom_call.1} parent=5 // pred_fallthru
        _
      %p146 = scmp.lt.s32.totalorder %s15, 2
      // Predicated region
      $region21: #{tpu_custom_call.1} parent=5 // pred_check
        %p147 = pneg %p146
      $region22: #{tpu_custom_call.1} parent=5 // pred_check_branch
        %149 = sbr.rel (%p147) target = $region24
      $region23: #{tpu_custom_call.1} parent=5 // pred_region
        // Predicated region
        $region25: #{tpu_custom_call.1} parent=23 // pred_check
          %p150 = pneg %p49
        $region26: #{tpu_custom_call.1} parent=23 // pred_check_branch
          %152 = sbr.rel (%p150) target = $region28
        $region27: #{tpu_custom_call.1} parent=23 // pred_region
          %s153 = sand.u32 %s39, 1
          %s154 = scalar_lea.sflag [#allocation3], %s153
          %s155 = sand.u32 %s39, 1
          %s156 = smul.addr %s155, 80
          %s157 = scalar_lea.vmem [#allocation2], %s156
          %s158 = smul.u32 2, %s23
          %s160 = ssub.s32 1280, 1280
          %161 = vsyncadd %s154, %s160
          %s162 = smul.addr %s22, 10
          %s163 = sadd.s32 %s158, %s162
          %s164 = smul.addr %s163, 128
          %s165 = scalar_lea.hbm %s0, %s164
          %s166 = sshll.u32 %s157, 4
          %s167 = int_to_ptr.vmem [resolvable:$true] %s166
          %172 = dma.hbm_to_vmem [thread:$0]  %s165, 1280, %s167, %s154, 256, 256, 16
        $region28: #{tpu_custom_call.1} parent=23 // pred_fallthru
          _
      $region24: #{tpu_custom_call.1} parent=5 // pred_fallthru
        _
      %p173 = scmp.le.s32.totalorder 1, %s15
      %p174 = scmp.lt.s32.totalorder %s15, 3
      %p175 = pnand %p173, %p174
      %p176 = pneg %p175
      // Predicated region
      $region29: #{tpu_custom_call.1} parent=5 // pred_check
        _
      $region30: #{tpu_custom_call.1} parent=5 // pred_check_branch
        %178 = sbr.rel (%p175) target = $region32
      $region31: #{tpu_custom_call.1} parent=5 // pred_region
        %s179 = ssub.s32 %s15, 1
        %s180 = sand.u32 %s42, 1
        %s181 = scalar_lea.sflag [#allocation3], %s180
        %s182 = sand.u32 %s42, 1
        %s183 = smul.addr %s182, 80
        %s184 = scalar_lea.vmem [#allocation2], %s183
        // Predicated region
        $region33: #{tpu_custom_call.1} parent=31 // pred_check
          %p185 = pneg %p55
        $region34: #{tpu_custom_call.1} parent=31 // pred_check_branch
          %187 = sbr.rel (%p185) target = $region36
        $region35: #{tpu_custom_call.1} parent=31 // pred_region
          %188 = dma.done %s181, 1280
        $region36: #{tpu_custom_call.1} parent=31 // pred_fallthru
          _
        %s189 = sand.u32 %s42, 1
        %s190 = scalar_lea.sflag [#allocation3], %s189
        %s191 = sand.u32 %s42, 1
        %s192 = smul.addr %s191, 80
        %s193 = scalar_lea.vmem [#allocation2], %s192
        %p194 = pneg %p55
        %p195 = pneg %p52
        %p196 = pneg %p76
        %p197 = pneg %p73
        %p198 = pneg %p97
        %p199 = pneg %p94
        %p200 = pneg %p125
        %p201 = pneg %p122
        %s202 = sand.u32 %s112, 1
        %s203 = scalar_lea.sflag [#allocation4], %s202
        %s204 = sand.u32 %s112, 1
        %s205 = smul.addr %s204, 16
        %s206 = scalar_lea.vmem [#allocation5], %s205
        %s207 = smul.u32 2, %s25
        %s208 = smul.u32 2, %s25
        %v209 = vld [vmem:[%s1] sm:$0xff]
        %v210 = vld [vmem:[%s184] sm:$0xff]
        %v211 = vld [vmem:[%s184 + $0x8] sm:$0xff]
        %v212 = vld [vmem:[%s184 + $0x10] sm:$0xff]
        %v213 = vld [vmem:[%s184 + $0x18] sm:$0xff]
        %v214 = vld [vmem:[%s184 + $0x20] sm:$0xff]
        %v215 = vld [vmem:[%s184 + $0x28] sm:$0xff]
        %v216 = vld [vmem:[%s184 + $0x30] sm:$0xff]
        %v217 = vld [vmem:[%s184 + $0x38] sm:$0xff]
        %v218 = vld [vmem:[%s184 + $0x40] sm:$0xff]
        %v219 = vld [vmem:[%s184 + $0x48] sm:$0xff]
        %v220 = vld [vmem:[%s2] sm:$0xff]
        %222 = vset.pattern.permute.xlu0 0
        %223 = vperm.xlu0 %222, %v220
        %v224 = vpop.permute.xlu0 %223
        %vm226 = vcmask 326656
        %v228 = vsel %vm226, %v209, 0
        %230 = vmatprep.subr.mxu0 %v211
        %231 = vmatpush1.msra.mxu0 %v210
        %232 = vmatprep.subr.mxu0 %v213
        %233 = vmatpush1.msra.mxu0 %v212
        %234 = vmatprep.subr.mxu0 %v215
        %235 = vmatpush1.msra.mxu0 %v214
        %236 = vmatprep.subr.mxu0 %v217
        %237 = vmatpush1.msra.mxu0 %v216
        %238 = vmatprep.subr.mxu0 %v219
        %239 = vmatpush1.msra.mxu0 %v218
        %240 = vmatprep.subr.mxu0 0.0
        %241 = vmatpush1.msra.mxu0 0.0
        %242 = vmatprep.subr.mxu0 0.0
        %243 = vmatpush1.msra.mxu0 0.0
        %244 = vmatprep.subr.mxu0 0.0
        %245 = vmatpush1.msra.mxu0 0.0
        %246 = vmatprep.subr.mxu0 0.0
        %247 = vmatpush1.msra.mxu0 0.0
        %248 = vmatprep.subr.mxu0 0.0
        %249 = vmatpush1.msra.mxu0 0.0
        %250 = vmatprep.subr.mxu0 0.0
        %251 = vmatpush1.msra.mxu0 0.0
        %252 = vmatprep.subr.mxu0 0.0
        %253 = vmatpush1.msra.mxu0 0.0
        %254 = vmatprep.subr.mxu0 0.0
        %255 = vmatpush1.msra.mxu0 0.0
        %256 = vmatprep.subr.mxu0 0.0
        %257 = vmatpush1.msra.mxu0 0.0
        %258 = vmatprep.subr.mxu0 0.0
        %259 = vmatpush1.msra.mxu0 0.0
        %260 = vmatprep.subr.mxu0 0.0
        %261 = vmatpush1.msra.mxu0 0.0
        %262 = vmatprep.subr.mxu0 0.0
        %263 = vmatpush1.msra.mxu0 0.0
        %264 = vmatprep.subr.mxu0 0.0
        %265 = vmatpush1.msra.mxu0 0.0
        %266 = vmatprep.subr.mxu0 0.0
        %267 = vmatpush1.msra.mxu0 0.0
        %268 = vmatprep.subr.mxu0 0.0
        %269 = vmatpush1.msra.mxu0 0.0
        %270 = vmatprep.subr.mxu0 0.0
        %271 = vmatpush1.msra.mxu0 0.0
        %272 = vmatprep.subr.mxu0 0.0
        %273 = vmatpush1.msra.mxu0 0.0
        %274 = vmatprep.subr.mxu0 0.0
        %275 = vmatpush1.msra.mxu0 0.0
        %276 = vmatprep.subr.mxu0 0.0
        %277 = vmatpush1.msra.mxu0 0.0
        %278 = vmatprep.subr.mxu0 0.0
        %279 = vmatpush1.msra.mxu0 0.0
        %280 = vmatprep.subr.mxu0 0.0
        %281 = vmatpush1.msra.mxu0 0.0
        %282 = vmatprep.subr.mxu0 0.0
        %283 = vmatpush1.msra.mxu0 0.0
        %284 = vmatprep.subr.mxu0 0.0
        %285 = vmatpush1.msra.mxu0 0.0
        %286 = vmatprep.subr.mxu0 0.0
        %287 = vmatpush1.msra.mxu0 0.0
        %288 = vmatprep.subr.mxu0 0.0
        %289 = vmatpush1.msra.mxu0 0.0
        %290 = vmatprep.subr.mxu0 0.0
        %291 = vmatpush1.msra.mxu0 0.0
        %292 = vmatprep.subr.mxu0 0.0
        %293 = vmatpush1.msra.mxu0 0.0
        %294 = vmatprep.mubr.f32.mxu0 0.0
        %295 = vmatmul.mubr.f32.gmra.mrb[0].mxu0 %v228
        %v296 = vpop.f32.mrb[0].mxu0
        %v297 = vadd.f32 %v224, %v296
        %v298 = vpop.f32.mrb[0].mxu0
        %v299 = vadd.f32 %v224, %v298
        %300 = vdwg.mxu0
        %301 = vst [vmem:[%s206] sm:$0xff] %v297
        %302 = vst [vmem:[%s206 + $0x8] sm:$0xff] %v299
        %s303 = sand.u32 %s112, 1
        %s304 = scalar_lea.sflag [#allocation4], %s303
        %s305 = sand.u32 %s112, 1
        %s306 = smul.addr %s305, 16
        %s307 = scalar_lea.vmem [#allocation5], %s306
        // Predicated region
        $region37: #{tpu_custom_call.1} parent=31 // pred_check
          %p308 = pneg %p122
        $region38: #{tpu_custom_call.1} parent=31 // pred_check_branch
          %310 = sbr.rel (%p308) target = $region40
        $region39: #{tpu_custom_call.1} parent=31 // pred_region
          %s311 = smul.u32 2, %s25
          %s313 = ssub.s32 256, 256
          %314 = vsyncadd %s304, %s313
          %s315 = smul.addr %s24, 2
          %s316 = sadd.s32 %s311, %s315
          %s317 = smul.addr %s316, 128
          %s318 = scalar_lea.hbm %s3, %s317
          %s320 = sshll.u32 %s307, 4
          %s321 = int_to_ptr.vmem [resolvable:$true] %s320
          %323 = dma.vmem_to_hbm [thread:$0]  %s321, 256, %s318, %s304
        $region40: #{tpu_custom_call.1} parent=31 // pred_fallthru
          _
      $region32: #{tpu_custom_call.1} parent=5 // pred_fallthru
        _
      %p324 = scmp.le.s32.totalorder 2, %s15
      // Predicated region
      $region41: #{tpu_custom_call.1} parent=5 // pred_check
        %p325 = pneg %p324
      $region42: #{tpu_custom_call.1} parent=5 // pred_check_branch
        %327 = sbr.rel (%p325) target = $region44
      $region43: #{tpu_custom_call.1} parent=5 // pred_region
        %s328 = ssub.s32 %s15, 2
        // Predicated region
        $region45: #{tpu_custom_call.1} parent=43 // pred_check
          %p329 = pneg %p128
        $region46: #{tpu_custom_call.1} parent=43 // pred_check_branch
          %331 = sbr.rel (%p329) target = $region48
        $region47: #{tpu_custom_call.1} parent=43 // pred_region
          %s332 = sand.u32 %s113, 1
          %s333 = scalar_lea.sflag [#allocation4], %s332
          %s334 = sand.u32 %s113, 1
          %s335 = smul.addr %s334, 16
          %s336 = scalar_lea.vmem [#allocation5], %s335
          %337 = dma.done %s333, 256
        $region48: #{tpu_custom_call.1} parent=43 // pred_fallthru
          _
      $region44: #{tpu_custom_call.1} parent=5 // pred_fallthru
        _
    $region6: #{tpu_custom_call.1} parent=1 // loop_footer
      %s19 = sadd.s32 1, %s15
    $region7: #{tpu_custom_call.1} parent=1 // loop_footer_branch
      %14 = sbr.rel target = $region3
    $region8: #{tpu_custom_call.1} parent=1 // loop_exit
      _
    %338 = vsyncpa [#allocation3], 1
    %s339 = scalar_lea.sflag [#allocation3], 1
    %340 = vsyncpa %s339, 1
    %341 = vsyncpa [#allocation4], 1
    %s342 = scalar_lea.sflag [#allocation4], 1
    %343 = vsyncpa %s342, 1

</llo_original>
